<compile_context>
chip_gen: v7x
topology: tpu7x:2x2x1
jax: 0.10.0
libtpu: 0.0.40
codegen_flags: <defaults>
</compile_context>

<pallas_src>
import jax
import jax.numpy as jnp
from jax.experimental import pallas as pl
from jax.experimental.pallas import tpu as pltpu


# ----------------------------- helpers -----------------------------

def _round_up(x, m):
    return ((x + m - 1) // m) * m


def _choose_row_tile(n, preferred=512):
    """16-aligned row tile: big enough to minimize weight re-streaming, small enough
    to bound ragged-tile padding overhead (~<25%)."""
    n16 = _round_up(n, 16)
    if n16 <= preferred:
        return n16                      # single row tile, minimal padding
    tm = preferred
    while tm > 128 and (_round_up(n, tm) - n) * 4 > n:
        tm //= 2
    return tm


_NEG_FILL = -1e30   # logits value assigned to padded vocab lanes inside the norm kernel
_MAX_SINGLE_K = 4096          # collapse the contraction axis when Dp <= this
_VMEM_LIMIT = 48 * 1024 * 1024  # safe on v7x (64 MiB phys), fine on v5e/v6e
_NORM_VMEM_BUDGET = 24 * 1024 * 1024  # in+out, double-buffered, f32


# ----------------------------- Pallas kernels -----------------------------

def _proj_kernel_2d(feat_ref, w_ref, b_ref, out_ref):
    # feat (tm, Dp) bf16, w (Dp, tn) bf16, b (1, tn) f32, out (tm, tn) f32
    out_ref[...] = (
        jnp.dot(feat_ref[...], w_ref[...], preferred_element_type=jnp.float32)
        + b_ref[...]
    )


def _proj_kernel_3d(feat_ref, w_ref, b_ref, out_ref):
    # feat (tm, tk) bf16, w (tk, tn) bf16, b (1, tn) f32, out (tm, tn) f32.
    # out block is revisited across k (index map ignores k), so accumulate directly
    # into it -- no VMEM scratch needed.
    k = pl.program_id(2)

    @pl.when(k == 0)
    def _():
        out_ref[...] = jnp.broadcast_to(b_ref[...], out_ref.shape)

    out_ref[...] += jnp.dot(feat_ref[...], w_ref[...],
                            preferred_element_type=jnp.float32)


def _make_norm_kernel(valid_v, padded_v, log_probs):
    """Row-tiled softmax / log_softmax over the full (padded) vocab axis.
    Padded vocab lanes (col >= valid_v) are masked in-kernel, so the padded
    projection output can be consumed directly with no pad/slice HBM passes."""
    def kernel(x_ref, o_ref):
        x = x_ref[...]
        if valid_v < padded_v:
            col = jax.lax.broadcasted_iota(jnp.int32, x.shape, 1)
            x = jnp.where(col < valid_v, x, _NEG_FILL)
        m = jnp.max(x, axis=-1, keepdims=True)
        shifted = x - m
        e = jnp.exp(shifted)
        s = jnp.sum(e, axis=-1, keepdims=True)
        if log_probs:
            o_ref[...] = shifted - jnp.log(s)
        else:
            o_ref[...] = e / s          # exact division: rows sum to 1
    return kernel


# ----------------------------- pallas_call wrappers -----------------------------

def output_layer_pallas(features_2d, w_pad_bf16, b_pad_f32, *, tn, tk,
                        tm_pref=512, vmem_limit_bytes=_VMEM_LIMIT):
    """features (N, D) @ W_pad (Dp, Vp) + b_pad -> padded (Np, Vp) f32 logits.

    W/b are pre-cast + pre-padded at module init. Returns the PADDED logits so the
    caller can hand them zero-copy to the normalization kernel.
    """
    N, D = features_2d.shape
    Dp, Vp = w_pad_bf16.shape
    assert Vp % tn == 0 and Dp % tk == 0 and D <= Dp

    tm = _choose_row_tile(N, tm_pref)
    Np = _round_up(N, tm)

    feat = features_2d.astype(jnp.bfloat16)          # small (N, D) cast; weights are pre-cast
    if (Np, Dp) != (N, D):
        feat = jnp.pad(feat, ((0, Np - N), (0, Dp - D)))

    nk = Dp // tk
    if nk == 1:
        # Contraction collapsed: one dot per (i, j) tile, no accumulator, no pl.when.
        grid = (Np // tm, Vp // tn)
        kernel = _proj_kernel_2d
        in_specs = [
            pl.BlockSpec((tm, tk), lambda i, j: (i, 0)),
            pl.BlockSpec((tk, tn), lambda i, j: (0, j)),
            pl.BlockSpec((1, tn), lambda i, j: (0, j)),
        ]
        out_specs = pl.BlockSpec((tm, tn), lambda i, j: (i, j))
        dims = ("parallel", "parallel")
    else:
        grid = (Np // tm, Vp // tn, nk)
        kernel = _proj_kernel_3d
        in_specs = [
            pl.BlockSpec((tm, tk), lambda i, j, k: (i, k)),
            pl.BlockSpec((tk, tn), lambda i, j, k: (k, j)),
            pl.BlockSpec((1, tn), lambda i, j, k: (0, j)),
        ]
        out_specs = pl.BlockSpec((tm, tn), lambda i, j, k: (i, j))
        dims = ("parallel", "parallel", "arbitrary")

    flops = 2 * Np * Dp * Vp
    bytes_accessed = (
        Np * Dp * 2 * (Vp // tn)      # feature stream, re-read per vocab tile (bf16)
        + Dp * Vp * 2 * (Np // tm)    # weight stream, re-read per row tile (bf16)
        + Vp * 4 * (Np // tm)         # bias stream (f32)
        + Np * Vp * 4                 # logits writeback (f32)
    )

    out = pl.pallas_call(
        kernel,
        out_shape=jax.ShapeDtypeStruct((Np, Vp), jnp.float32),
        grid_spec=pltpu.PrefetchScalarGridSpec(
            num_scalar_prefetch=0,
            grid=grid,
            in_specs=in_specs,
            out_specs=out_specs,
        ),
        compiler_params=pltpu.CompilerParams(
            dimension_semantics=dims,
            vmem_limit_bytes=vmem_limit_bytes,
        ),
        cost_estimate=pl.CostEstimate(
            flops=flops, transcendentals=0, bytes_accessed=bytes_accessed),
    )(feat, w_pad_bf16, b_pad_f32)

    return out   # padded (Np, Vp); rows [0, N) / cols [0, V) are valid


def _normalize_pallas(x_padded, valid_v, log_probs):
    """Row-tiled softmax / log_softmax over an already 8/128-padded (Np, Vp) array.
    Row tile is sized from a VMEM budget so any vocab size fits (incl. v7x 64 MiB)."""
    Np, Vp = x_padded.shape
    budget_rows = (_NORM_VMEM_BUDGET // (16 * Vp)) // 8 * 8   # in+out, double-buffered, f32
    tm = max(8, min(256, Np, budget_rows))
    while Np % tm:        # Np is always a multiple of 8 -> terminates (worst case tm=8)
        tm -= 8

    out = pl.pallas_call(
        _make_norm_kernel(valid_v, Vp, log_probs),
        out_shape=jax.ShapeDtypeStruct((Np, Vp), jnp.float32),
        grid=(Np // tm,),
        in_specs=[pl.BlockSpec((tm, Vp), lambda i: (i, 0))],
        out_specs=pl.BlockSpec((tm, Vp), lambda i: (i, 0)),
        compiler_params=pltpu.CompilerParams(
            dimension_semantics=("parallel",),
            vmem_limit_bytes=_VMEM_LIMIT,
        ),
    )(x_padded)
    return out


# ----------------------------- Decoder module (JAX glue) -----------------------------

class FairseqDecoderPallas:
    """Minimal concrete FairseqDecoder with Pallas hot paths."""

    def __init__(self, vocab_size, embed_dim, key):
        self.vocab_size = vocab_size
        self.embed_dim = embed_dim
        self.adaptive_softmax = None
        self.onnx_trace = False

        k_emb, k_w, k_b = jax.random.split(key, 3)
        self.embed_tokens = jax.random.normal(k_emb, (vocab_size, embed_dim), jnp.float32) * 0.02
        self.out_w = jax.random.normal(k_w, (embed_dim, vocab_size), jnp.float32) * 0.02
        self.out_b = jax.random.normal(k_b, (vocab_size,), jnp.float32) * 0.01

        # --- static tiling geometry for the projection ---
        self.tn = 1024 if vocab_size >= 1024 else _round_up(vocab_size, 128)
        Vp = _round_up(vocab_size, self.tn)
        d128 = _round_up(embed_dim, 128)
        if d128 <= _MAX_SINGLE_K:
            self.tk, Dp = d128, d128
        else:
            self.tk, Dp = 2048, _round_up(embed_dim, 2048)
        self.Dp, self.Vp = Dp, Vp

        # Pre-cast + pre-pad the LM head ONCE (removes the per-forward f32->bf16 DxV copy).
        self.out_w_p = jnp.pad(self.out_w.astype(jnp.bfloat16),
                               ((0, Dp - embed_dim), (0, Vp - vocab_size)))
        self.out_b_p = jnp.pad(self.out_b.astype(jnp.float32),
                               (0, Vp - vocab_size)).reshape(1, Vp)

    # ------------- FairseqDecoder API -------------

    def extract_features(self, prev_output_tokens, encoder_out=None, **kwargs):
        # (batch, tgt_len) -> (batch, tgt_len, embed_dim); gather stays as JAX glue.
        # TODO(synk): fuse the gather into the projection via PrefetchScalarGridSpec +
        # pl.Element row-gather at production D (avoids the (N, D) HBM round-trip).
        x = jnp.take(self.embed_tokens, prev_output_tokens, axis=0)
        return x, {"encoder_out": encoder_out}

    def _project(self, features):
        B, T, D = features.shape
        padded = output_layer_pallas(features.reshape(B * T, D),
                                     self.out_w_p, self.out_b_p,
                                     tn=self.tn, tk=self.tk)
        logits = padded[:B * T, :self.vocab_size].reshape(B, T, self.vocab_size)
        return logits, padded

    def output_layer(self, features, **kwargs):
        logits, _ = self._project(features)
        return logits

    def forward(self, prev_output_tokens, encoder_out=None, **kwargs):
        x, extra = self.extract_features(prev_output_tokens, encoder_out=encoder_out, **kwargs)
        logits, padded = self._project(x)
        # Zero-copy handoff of the padded logits to get_normalized_probs (model-specific
        # output in `extra`, per fairseq convention) -- avoids slice + re-pad HBM passes.
        extra["padded_logits_2d"] = padded
        return (logits, extra)

    def get_normalized_probs(self, net_output, log_probs, sample=None):
        # TODO(synk): adaptive_softmax branch not implemented (always None in this setup).
        logits = net_output[0]
        extra = net_output[1] if len(net_output) > 1 else None
        B, T, V = logits.shape
        N = B * T

        if isinstance(extra, dict) and "padded_logits_2d" in extra:
            x_padded = extra["padded_logits_2d"]          # (Np, Vp) f32, already aligned
        else:
            Np, Vp = _round_up(max(N, 8), 8), _round_up(V, 128)
            x_padded = jnp.pad(logits.reshape(N, V).astype(jnp.float32),
                               ((0, Np - N), (0, Vp - V)))

        out = _normalize_pallas(x_padded, V, log_probs)
        return out[:N, :V].reshape(B, T, V)

    def max_positions(self):
        return 1000000.0

    def upgrade_state_dict_named(self, state_dict, name):
        return state_dict

    def prepare_for_onnx_export_(self):
        self.onnx_trace = True


# ----------------------------- main -----------------------------

if __name__ == "__main__":
    key = jax.random.PRNGKey(0)
    k_tok, k_params = jax.random.split(key)

    batch, tgt_len, embed_dim, vocab = 2, 8, 32, 32
    prev_output_tokens = jax.random.randint(k_tok, (batch, tgt_len), 0, vocab, dtype=jnp.int32)

    decoder = FairseqDecoderPallas(vocab, embed_dim, k_params)

    logits, extra = decoder.forward(prev_output_tokens, encoder_out=None)
    logp = decoder.get_normalized_probs((logits, extra), log_probs=True)
    probs = decoder.get_normalized_probs((logits, extra), log_probs=False)
    # also exercise the fallback (no padded handoff) path
    logp_fb = decoder.get_normalized_probs((logits, {"encoder_out": None}), log_probs=True)

    jax.block_until_ready((logits, logp, probs, logp_fb))

    # sanity checks vs a plain-JAX reference that mirrors the bf16 MXU inputs
    feats = jnp.take(decoder.embed_tokens, prev_output_tokens, axis=0)
    ref_logits = jnp.dot(
        feats.reshape(-1, embed_dim).astype(jnp.bfloat16),
        decoder.out_w.astype(jnp.bfloat16),
        preferred_element_type=jnp.float32,
    ).reshape(batch, tgt_len, vocab) + decoder.out_b

    assert logits.shape == (batch, tgt_len, vocab)
    assert jnp.allclose(logits, ref_logits, atol=1e-4, rtol=1e-4)
    assert jnp.allclose(logp, jax.nn.log_softmax(ref_logits, axis=-1), atol=1e-4)
    assert jnp.allclose(probs, jax.nn.softmax(ref_logits, axis=-1), atol=1e-4)
    assert jnp.allclose(logp_fb, jax.nn.log_softmax(ref_logits, axis=-1), atol=1e-4)

    print("KERNEL_OK")
</pallas_src>

<mosaic_0001>
module attributes {stable_mosaic.version = 11 : i64} {
  func.func @_proj_kernel_2d(%arg0: i32, %arg1: i32, %arg2: memref<16x128xbf16, #tpu.memory_space<vmem>>, %arg3: memref<128x128xbf16, #tpu.memory_space<vmem>>, %arg4: memref<1x128xf32, #tpu.memory_space<vmem>>, %arg5: memref<16x128xf32, #tpu.memory_space<vmem>>) attributes {dimension_semantics = [#tpu.dimension_semantics<parallel>, #tpu.dimension_semantics<parallel>], iteration_bounds = array<i64: 1, 1>, scalar_prefetch = 0 : i64, scratch_operands = 0 : i64, tpu.core_type = #tpu.core_type<tc>, window_params = [{transform_indices = @transform_0, window_bounds = array<i64: 16, 128>}, {transform_indices = @transform_1, window_bounds = array<i64: 128, 128>}, {transform_indices = @transform_2, window_bounds = array<i64: 1, 128>}, {transform_indices = @transform_3, window_bounds = array<i64: 16, 128>}]} {
    %c0 = arith.constant 0 : index
    %c0_0 = arith.constant 0 : index
    %0 = vector.load %arg2[%c0, %c0_0] : memref<16x128xbf16, #tpu.memory_space<vmem>>, vector<16x128xbf16>
    %c0_1 = arith.constant 0 : index
    %c0_2 = arith.constant 0 : index
    %1 = vector.load %arg3[%c0_1, %c0_2] : memref<128x128xbf16, #tpu.memory_space<vmem>>, vector<128x128xbf16>
    %cst = arith.constant dense<0.000000e+00> : vector<16x128xf32>
    %2 = tpu.matmul %0, %1, %cst {dimension_numbers = #tpu.dot_dimension_numbers<[1], [0], [0], [1], [0, 0, 1, 1], [], []>} : vector<16x128xbf16>, vector<128x128xbf16>, vector<16x128xf32> -> vector<16x128xf32>
    %c0_3 = arith.constant 0 : index
    %c0_4 = arith.constant 0 : index
    %3 = vector.load %arg4[%c0_3, %c0_4] : memref<1x128xf32, #tpu.memory_space<vmem>>, vector<1x128xf32>
    %4 = vector.broadcast %3 : vector<1x128xf32> to vector<16x128xf32>
    %5 = arith.addf %2, %4 : vector<16x128xf32>
    %c0_5 = arith.constant 0 : index
    %c0_6 = arith.constant 0 : index
    %6 = vector.load %arg5[%c0_5, %c0_6] : memref<16x128xf32, #tpu.memory_space<vmem>>, vector<16x128xf32>
    tpu.vector_store %arg5[%c0_5, %c0_6], %5 {strides = array<i32>} : memref<16x128xf32, #tpu.memory_space<vmem>>, vector<16x128xf32>,
    return
  }
  func.func @transform_0(%arg0: i32, %arg1: i32) -> (i32, i32) {
    %c0_i32 = arith.constant 0 : i32
    %c0_i32_0 = arith.constant 0 : i32
    return %arg0, %c0_i32 : i32, i32
  }
  func.func @transform_1(%arg0: i32, %arg1: i32) -> (i32, i32) {
    %c0_i32 = arith.constant 0 : i32
    %c0_i32_0 = arith.constant 0 : i32
    return %c0_i32, %arg1 : i32, i32
  }
  func.func @transform_2(%arg0: i32, %arg1: i32) -> (i32, i32) {
    %c0_i32 = arith.constant 0 : i32
    %c0_i32_0 = arith.constant 0 : i32
    return %c0_i32, %arg1 : i32, i32
  }
  func.func @transform_3(%arg0: i32, %arg1: i32) -> (i32, i32) {
    %c0_i32 = arith.constant 0 : i32
    return %arg0, %arg1 : i32, i32
  }
}

</mosaic_0001>

<llo_original>
// kernel: tpu_custom_call.1
$region0: #{tpu_custom_call.1}
  #allocation0 [shape = 'u32[]', space=smem, size = 0x4, offset = 0x4, fixed_abs, tag = 'smem constant byte address 0x4 - core index']
  #allocation1 [shape = 'u32[144,128]{1,0:T(1,128)}', space=vmem, size = 0x12000, scoped, tag = 'internal scratch']
  %s0 = inlined_call_operand.hbm [shape: bf16[16,128], index: 0, kind: input, shape index: {}]
  %s1 = inlined_call_operand.hbm [shape: bf16[128,128], index: 1, kind: input, shape index: {}]
  %s2 = inlined_call_operand.vmem [shape: f32[1,128], index: 2, kind: input, shape index: {}]
  %s3 = inlined_call_operand.hbm [shape: f32[16,128], index: 3, kind: output, shape index: {}]
  %s4 = sld [smem:[#allocation0]]
  $region30: #{tpu_custom_call.1} parent=0
    _
  %s6 = ssub.s32 1, %s4
  %s7 = scalar_select 0, %s6, %s4
  $region1: #{tpu_custom_call.1} parent=0
    #allocation2 [shape = 'u8[4096]{0}', space=vmem, size = 0x1000, scoped, tag = 'input window, operand 0, single buffered']
    #allocation3 [shape = 's32[1]{0}', space=sflag, size = 0x4, scoped, tag = 'scoped memory for tpu_custom_call.1']
    #allocation4 [shape = 's32[1]{0}', space=sflag, size = 0x4, scoped, tag = 'scoped memory for tpu_custom_call.1']
    #allocation5 [shape = 'u8[32768]{0}', space=vmem, size = 0x8000, scoped, tag = 'input window, operand 1, single buffered']
    #allocation6 [shape = 's32[1]{0}', space=sflag, size = 0x4, scoped, tag = 'scoped memory for tpu_custom_call.1']
    #allocation7 [shape = 'u8[8192]{0}', space=vmem, size = 0x2000, scoped, tag = 'output window, operand 0, single buffered']
    %8 = vsyncpa [#allocation3], 0
    %9 = vsyncpa [#allocation6], 0
    %10 = vsyncpa [#allocation4], 0
    // Predicated region
    $region2: #{tpu_custom_call.1} parent=1 // pred_check
      _
    $region3: #{tpu_custom_call.1} parent=1 // pred_check_branch
      %12 = sbr.rel (0) target = $region5
    $region4: #{tpu_custom_call.1} parent=1 // pred_region
      %s14 = ssub.s32 128, 128
      %15 = vsyncadd [#allocation3], %s14
      %s16 = sshll.u32 [#allocation2], 4
      %s17 = int_to_ptr.vmem [resolvable:$true] %s16
      %22 = dma.hbm_to_vmem [thread:$0]  %s0, 128, %s17, [#allocation3], 64, 64, 4
    $region5: #{tpu_custom_call.1} parent=1 // pred_fallthru
      _
    // Predicated region
    $region6: #{tpu_custom_call.1} parent=1 // pred_check
      _
    $region7: #{tpu_custom_call.1} parent=1 // pred_check_branch
      %24 = sbr.rel (0) target = $region9
    $region8: #{tpu_custom_call.1} parent=1 // pred_region
      %s26 = ssub.s32 1024, 1024
      %27 = vsyncadd [#allocation6], %s26
      %s28 = sshll.u32 [#allocation5], 4
      %s29 = int_to_ptr.vmem [resolvable:$true] %s28
      %34 = dma.hbm_to_vmem [thread:$0]  %s1, 1024, %s29, [#allocation6], 64, 64, 4
    $region9: #{tpu_custom_call.1} parent=1 // pred_fallthru
      _
    // Predicated region
    $region10: #{tpu_custom_call.1} parent=1 // pred_check
      _
    $region11: #{tpu_custom_call.1} parent=1 // pred_check_branch
      %36 = sbr.rel (0) target = $region13
    $region12: #{tpu_custom_call.1} parent=1 // pred_region
      _
    $region13: #{tpu_custom_call.1} parent=1 // pred_fallthru
      _
    // Predicated region
    $region14: #{tpu_custom_call.1} parent=1 // pred_check
      _
    $region15: #{tpu_custom_call.1} parent=1 // pred_check_branch
      %38 = sbr.rel (0) target = $region17
    $region16: #{tpu_custom_call.1} parent=1 // pred_region
      %39 = dma.done [#allocation3], 128
    $region17: #{tpu_custom_call.1} parent=1 // pred_fallthru
      _
    // Predicated region
    $region18: #{tpu_custom_call.1} parent=1 // pred_check
      _
    $region19: #{tpu_custom_call.1} parent=1 // pred_check_branch
      %41 = sbr.rel (0) target = $region21
    $region20: #{tpu_custom_call.1} parent=1 // pred_region
      %42 = dma.done [#allocation6], 1024
    $region21: #{tpu_custom_call.1} parent=1 // pred_fallthru
      _
    %v44 = vld [vmem:[#allocation2] sm:$0xf]
    %v45 = vld [vmem:[#allocation2 + $0x4] sm:$0xf]
    %v46 = vld [vmem:[#allocation5] sm:$0xf]
    %v47 = vld [vmem:[#allocation5 + $0x4] sm:$0xf]
    %v48 = vld [vmem:[#allocation5 + $0x8] sm:$0xf]
    %v49 = vld [vmem:[#allocation5 + $0xc] sm:$0xf]
    %v50 = vld [vmem:[#allocation5 + $0x10] sm:$0xf]
    %v51 = vld [vmem:[#allocation5 + $0x14] sm:$0xf]
    %v52 = vld [vmem:[#allocation5 + $0x18] sm:$0xf]
    %v53 = vld [vmem:[#allocation5 + $0x1c] sm:$0xf]
    %v54 = vld [vmem:[#allocation5 + $0x20] sm:$0xf]
    %v55 = vld [vmem:[#allocation5 + $0x24] sm:$0xf]
    %v56 = vld [vmem:[#allocation5 + $0x28] sm:$0xf]
    %v57 = vld [vmem:[#allocation5 + $0x2c] sm:$0xf]
    %v58 = vld [vmem:[#allocation5 + $0x30] sm:$0xf]
    %v59 = vld [vmem:[#allocation5 + $0x34] sm:$0xf]
    %v60 = vld [vmem:[#allocation5 + $0x38] sm:$0xf]
    %v61 = vld [vmem:[#allocation5 + $0x3c] sm:$0xf]
    %v62 = vld [vmem:[%s2] sm:$0x1]
    %v64 = vlaneseq
    %v65 = vshrl.u32 %v64, 7
    %v66 = vsub.s32 0, %v65
    %v67 = vrot.slane %v62, %v66
    %v71 = vunpack.c.l.b16 %v44
    %v72 = vunpack.c.l.b16 %v45
    %v73 = vpack.c.b16 %v72, %v71
    %v91 = vunpack.c.l.b16 %v46
    %v92 = vunpack.c.l.b16 %v47
    %v93 = vunpack.c.l.b16 %v48
    %v94 = vunpack.c.l.b16 %v49
    %v95 = vunpack.c.l.b16 %v50
    %v96 = vunpack.c.l.b16 %v51
    %v97 = vunpack.c.l.b16 %v52
    %v98 = vunpack.c.l.b16 %v53
    %v99 = vunpack.c.l.b16 %v54
    %v100 = vunpack.c.l.b16 %v55
    %v101 = vunpack.c.l.b16 %v56
    %v102 = vunpack.c.l.b16 %v57
    %v103 = vunpack.c.l.b16 %v58
    %v104 = vunpack.c.l.b16 %v59
    %v105 = vunpack.c.l.b16 %v60
    %v106 = vunpack.c.l.b16 %v61
    %v107 = vpack.c.b16 %v92, %v91
    %v108 = vpack.c.b16 %v94, %v93
    %v109 = vpack.c.b16 %v96, %v95
    %v110 = vpack.c.b16 %v98, %v97
    %v111 = vpack.c.b16 %v100, %v99
    %v112 = vpack.c.b16 %v102, %v101
    %v113 = vpack.c.b16 %v104, %v103
    %v114 = vpack.c.b16 %v106, %v105
    %123 = vmatprep.subr.bf16.mxu0 0
    %124 = vmatpush1.bf16.msra.mxu0 %v107
    %125 = vmatprep.subr.bf16.mxu0 0
    %126 = vmatpush1.bf16.msra.mxu0 %v108
    %127 = vmatprep.subr.bf16.mxu0 0
    %128 = vmatpush1.bf16.msra.mxu0 %v109
    %129 = vmatprep.subr.bf16.mxu0 0
    %130 = vmatpush1.bf16.msra.mxu0 %v110
    %131 = vmatprep.subr.bf16.mxu0 0
    %132 = vmatpush1.bf16.msra.mxu0 %v111
    %133 = vmatprep.subr.bf16.mxu0 0
    %134 = vmatpush1.bf16.msra.mxu0 %v112
    %135 = vmatprep.subr.bf16.mxu0 0
    %136 = vmatpush1.bf16.msra.mxu0 %v113
    %137 = vmatprep.subr.bf16.mxu0 0
    %138 = vmatpush1.bf16.msra.mxu0 %v114
    %139 = vmatprep.subr.bf16.mxu0 0
    %140 = vmatpush1.bf16.msra.mxu0 0
    %141 = vmatprep.subr.bf16.mxu0 0
    %142 = vmatpush1.bf16.msra.mxu0 0
    %143 = vmatprep.subr.bf16.mxu0 0
    %144 = vmatpush1.bf16.msra.mxu0 0
    %145 = vmatprep.subr.bf16.mxu0 0
    %146 = vmatpush1.bf16.msra.mxu0 0
    %147 = vmatprep.subr.bf16.mxu0 0
    %148 = vmatpush1.bf16.msra.mxu0 0
    %149 = vmatprep.subr.bf16.mxu0 0
    %150 = vmatpush1.bf16.msra.mxu0 0
    %151 = vmatprep.subr.bf16.mxu0 0
    %152 = vmatpush1.bf16.msra.mxu0 0
    %153 = vmatprep.subr.bf16.mxu0 0
    %154 = vmatpush1.bf16.msra.mxu0 0
    %155 = vmatprep.mubr.bf16.mxu0 0
    %156 = vmatmul.mubr.bf16.gmra.mrb[0].mxu0 %v73
    %v157 = vpop.f32.mrb[0].mxu0
    %v158 = vadd.f32 %v67, %v157
    %v159 = vpop.f32.mrb[0].mxu0
    %v160 = vpop.f32.mrb[0].mxu0
    %v161 = vadd.f32 %v67, %v160
    %v162 = vpop.f32.mrb[0].mxu0
    %163 = vdwg.mxu0
    %164 = vst [vmem:[#allocation7] sm:$0xff] %v158
    %165 = vst [vmem:[#allocation7 + $0x8] sm:$0xff] %v161
    // Predicated region
    $region22: #{tpu_custom_call.1} parent=1 // pred_check
      _
    $region23: #{tpu_custom_call.1} parent=1 // pred_check_branch
      %167 = sbr.rel (0) target = $region25
    $region24: #{tpu_custom_call.1} parent=1 // pred_region
      %s169 = ssub.s32 256, 256
      %170 = vsyncadd [#allocation4], %s169
      %s171 = sshll.u32 [#allocation7], 4
      %s172 = int_to_ptr.vmem [resolvable:$true] %s171
      %177 = dma.vmem_to_hbm [thread:$0]  %s172, 256, %s3, [#allocation4], 128, 128, 8
    $region25: #{tpu_custom_call.1} parent=1 // pred_fallthru
      _
    // Predicated region
    $region26: #{tpu_custom_call.1} parent=1 // pred_check
      _
    $region27: #{tpu_custom_call.1} parent=1 // pred_check_branch
      %179 = sbr.rel (0) target = $region29
    $region28: #{tpu_custom_call.1} parent=1 // pred_region
      %180 = dma.done [#allocation4], 256
    $region29: #{tpu_custom_call.1} parent=1 // pred_fallthru
      _
    %181 = vsyncpa [#allocation3], 1
    %182 = vsyncpa [#allocation6], 1
    %183 = vsyncpa [#allocation4], 1

</llo_original>
